<compile_context>
chip_gen: v7x
topology: tpu7x:2x2x1
jax: 0.10.0
libtpu: 0.0.40
codegen_flags: <defaults>
</compile_context>

<pallas_src>
import math
from functools import partial

import jax
import jax.numpy as jnp
from jax.experimental import pallas as pl
from jax.experimental.pallas import tpu as pltpu


def _attention_kernel(x_ref, w_ref, b_ref, o_ref, *, T, E, fused, mxu_dtype):
    # x_ref / o_ref: (block_b, T*E) lane-dense slab  OR  (block_b, T, E)
    # w_ref: (E, 3E) fused (E % 128 == 0) or (3, E, E) stacked; pre-transposed to
    #        (in, out) with the 1/sqrt(E) score scale folded into the Q weights.
    # b_ref: (1, 3E) fused or (3, 1, E) stacked (Q bias pre-scaled).
    Bb = x_ref.shape[0]
    rows = Bb * T
    x2d = x_ref[...].reshape(rows, E)

    def mm(a, w):
        if mxu_dtype is not None:
            a = a.astype(mxu_dtype)
            w = w.astype(mxu_dtype)
        return jnp.dot(a, w, preferred_element_type=jnp.float32)

    if fused:
        # One wide MXU pass; E % 128 == 0 so the q/k/v slices are 128-lane aligned.
        qkv = mm(x2d, w_ref[...]) + b_ref[...]
        q, k, v = qkv[:, 0:E], qkv[:, E:2 * E], qkv[:, 2 * E:3 * E]
    else:
        # Small E: three separate dots (N padded to 128 on the MXU per pass anyway);
        # avoids lane-unaligned slicing of a fused (rows, 3E) result.
        q = mm(x2d, w_ref[0]) + b_ref[0]
        k = mm(x2d, w_ref[1]) + b_ref[1]
        v = mm(x2d, w_ref[2]) + b_ref[2]

    q = q.reshape(Bb, T, E)
    k = k.reshape(Bb, T, E)
    v = v.reshape(Bb, T, E)

    if mxu_dtype is not None:
        q = q.astype(mxu_dtype)
        k = k.astype(mxu_dtype)
        v = v.astype(mxu_dtype)

    # Batched scores (q already carries 1/sqrt(E)); no k.T materialized.
    scores = jnp.einsum("bqe,bke->bqk", q, k, preferred_element_type=jnp.float32)

    # Numerically stable softmax; all elementwise math stays f32 (v5e has no bf16 VPU/EUP).
    m = jnp.max(scores, axis=-1, keepdims=True)
    p = jnp.exp(scores - m)
    denom = jnp.sum(p, axis=-1, keepdims=True)
    attn = p * pl.reciprocal(denom, approx=True)        # EUP vrcp; exp dominates error

    if mxu_dtype is not None:
        attn = attn.astype(mxu_dtype)

    ctx = jnp.einsum("bqk,bke->bqe", attn, v, preferred_element_type=jnp.float32)
    o_ref[...] = ctx.reshape(o_ref.shape).astype(o_ref.dtype)

    # TODO(synk): KV-tiled online softmax (second 'arbitrary' grid axis + m/l/acc VMEM
    # scratch) once T grows beyond a few hundred; at T=8 the (T,T) block is trivial.


def _vmem_estimate_bytes(block_b, T, E, io_itemsize, mxu_itemsize=2):
    """Rough per-step VMEM footprint, used for block selection and vmem_limit_bytes."""
    rows = block_b * T
    io = 2 * 2 * rows * E * io_itemsize            # double-buffered x and out blocks
    qkv = rows * 3 * E * (4 + mxu_itemsize)        # f32 q/k/v (+ casted MXU copies)
    attn = 2 * block_b * T * T * 4                 # scores + attention weights (f32)
    ctx = rows * E * 4
    weights = 2 * (3 * E * E + 3 * E) * 4          # double-buffered weight + bias
    return io + qkv + attn + ctx + weights + (1 << 20)   # + 1 MiB slack


def _pick_block_b(B, T, E, io_itemsize, *, flat_io, target_rows=512,
                  vmem_budget_bytes=40 * 1024 * 1024):
    """Batch block: big enough that block_b*T >= ~target_rows MXU rows (amortizes the
    ~0.35us/step pipeline overhead), small enough to fit the VMEM budget, keeping >= 2
    'parallel' grid steps when free (v7x has two TensorCores), and keeping flat
    (block_b, T*E) blocks sublane-aligned (block_b a multiple of 8 or == B)."""
    divisors = [d for d in range(1, B + 1) if B % d == 0]
    if flat_io:
        divisors = [d for d in divisors if d == B or d % 8 == 0]
    fits = [d for d in divisors
            if _vmem_estimate_bytes(d, T, E, io_itemsize) <= vmem_budget_bytes]
    if not fits:
        fits = divisors[:1]
    block_b = fits[-1]                      # largest block that fits the budget
    for d in fits:                          # smallest block reaching the row target
        if d * T >= target_rows:
            block_b = d
            break
    if block_b == B and (B // 2) in fits:   # keep >= 2 steps for megacore when free
        block_b = B // 2
    return block_b


def temporal_attention(x, wq, bq, wk, bk, wv, bv, *, block_b=None,
                       mxu_dtype=jnp.bfloat16):
    """TemporalAttention.forward.  x: (B, T, E); weights (E, E) (PyTorch (out, in)
    layout); biases (E,).  Returns (B, T, E).

    mxu_dtype=jnp.bfloat16 (default) feeds bf16 MXU operands on all generations while
    keeping f32 accumulation and f32 softmax; pass mxu_dtype=None for exact f32 matmuls.
    """
    B, T, E = x.shape
    scale = 1.0 / math.sqrt(E)
    io_itemsize = x.dtype.itemsize

    # Fold the 1/sqrt(E) score scale into Q and pre-transpose weights to (in, out).
    fused = (E % 128 == 0)
    if fused:
        w_all = jnp.concatenate([(wq * scale).T, wk.T, wv.T], axis=1)       # (E, 3E)
        b_all = jnp.concatenate([bq * scale, bk, bv]).reshape(1, 3 * E)     # (1, 3E)
        w_spec = pl.BlockSpec((E, 3 * E), lambda i: (0, 0))
        b_spec = pl.BlockSpec((1, 3 * E), lambda i: (0, 0))
    else:
        w_all = jnp.stack([(wq * scale).T, wk.T, wv.T], axis=0)             # (3, E, E)
        b_all = jnp.stack([bq * scale, bk, bv], axis=0).reshape(3, 1, E)    # (3, 1, E)
        w_spec = pl.BlockSpec((3, E, E), lambda i: (0, 0, 0))
        b_spec = pl.BlockSpec((3, 1, E), lambda i: (0, 0, 0))
    # Weight/bias index maps are constant -> not re-DMA'd per step.  pl.Buffered(1) on
    # these specs would also halve their VMEM footprint; only worth it at much larger E.

    flops = 6 * B * T * E * E + 4 * B * T * T * E
    transcendentals = B * T * T
    bytes_accessed = (2 * B * T * E) * io_itemsize + (3 * E * E + 3 * E) * 4

    def build_and_run(flat_io):
        bb = block_b if block_b is not None else _pick_block_b(
            B, T, E, io_itemsize, flat_io=flat_io)
        assert B % bb == 0, (B, bb)
        grid_b = B // bb

        if flat_io:
            x_in = x.reshape(B, T * E)                    # wrapper-side layout plumbing
            io_spec = pl.BlockSpec((bb, T * E), lambda i: (i, 0))
            out_shape = jax.ShapeDtypeStruct((B, T * E), x.dtype)
        else:
            x_in = x
            io_spec = pl.BlockSpec((bb, T, E), lambda i: (i, 0, 0))
            out_shape = jax.ShapeDtypeStruct((B, T, E), x.dtype)

        est = _vmem_estimate_bytes(bb, T, E, io_itemsize,
                                   2 if mxu_dtype is not None else 4)
        vmem_limit = int(min(64 * 1024 * 1024, max(32 * 1024 * 1024, 2 * est)))

        out = pl.pallas_call(
            partial(_attention_kernel, T=T, E=E, fused=fused, mxu_dtype=mxu_dtype),
            out_shape=out_shape,
            grid_spec=pltpu.PrefetchScalarGridSpec(
                num_scalar_prefetch=0,
                grid=(grid_b,),
                in_specs=[io_spec, w_spec, b_spec],
                out_specs=io_spec,
            ),
            compiler_params=pltpu.CompilerParams(
                dimension_semantics=("parallel",),
                vmem_limit_bytes=vmem_limit,
            ),
            cost_estimate=pl.CostEstimate(
                flops=flops,
                transcendentals=transcendentals,
                bytes_accessed=bytes_accessed,
            ),
        )(x_in, w_all, b_all)
        return out.reshape(B, T, E)

    # Prefer lane-dense 2-D slabs (last dim T*E, multiple of 128) so every output store
    # is an unmasked vst; fall back to 3-D blocks if the flat relayout does not lower.
    if E % 128 != 0 and (T * E) % 128 == 0:
        try:
            return build_and_run(True)
        except Exception:  # noqa: BLE001 - Mosaic reshape support varies across jaxlib
            pass
    return build_and_run(False)


def _reference(x, wq, bq, wk, bk, wv, bv):
    q = jnp.einsum("bte,oe->bto", x, wq) + bq
    k = jnp.einsum("bte,oe->bto", x, wk) + bk
    v = jnp.einsum("bte,oe->bto", x, wv) + bv
    scores = jnp.einsum("bqe,bke->bqk", q, k) / math.sqrt(x.shape[-1])
    attn = jax.nn.softmax(scores, axis=-1)
    return jnp.einsum("bqk,bke->bqe", attn, v)


if __name__ == "__main__":
    B, T, E = 2, 8, 32  # batch, sequence length, embed_dim

    key = jax.random.PRNGKey(0)
    kx, kwq, kbq, kwk, kbk, kwv, kbv = jax.random.split(key, 7)

    x = jax.random.normal(kx, (B, T, E), dtype=jnp.float32)

    # Deterministic parameter init mimicking nn.Linear's uniform(-1/sqrt(E), 1/sqrt(E)).
    lim = 1.0 / math.sqrt(E)
    wq = jax.random.uniform(kwq, (E, E), jnp.float32, -lim, lim)
    bq = jax.random.uniform(kbq, (E,), jnp.float32, -lim, lim)
    wk = jax.random.uniform(kwk, (E, E), jnp.float32, -lim, lim)
    bk = jax.random.uniform(kbk, (E,), jnp.float32, -lim, lim)
    wv = jax.random.uniform(kwv, (E, E), jnp.float32, -lim, lim)
    bv = jax.random.uniform(kbv, (E,), jnp.float32, -lim, lim)

    ref = _reference(x, wq, bq, wk, bk, wv, bv)

    # Default fast path: bf16 MXU operands, f32 accumulation + f32 softmax.
    out = jax.block_until_ready(temporal_attention(x, wq, bq, wk, bk, wv, bv))
    assert out.shape == (B, T, E)
    assert jnp.allclose(out, ref, atol=3e-2, rtol=3e-2), "bf16 MXU path mismatch"

    # Exact f32 matmul path (only the approximate softmax reciprocal differs).
    out_f32 = jax.block_until_ready(
        temporal_attention(x, wq, bq, wk, bk, wv, bv, mxu_dtype=None))
    assert jnp.allclose(out_f32, ref, atol=2e-3, rtol=2e-3), "f32 path mismatch"

    print("KERNEL_OK")
</pallas_src>

<mosaic_0001>
module attributes {stable_mosaic.version = 11 : i64} {
  func.func @_attention_kernel(%arg0: i32, %arg1: memref<2x256xf32, #tpu.memory_space<vmem>>, %arg2: memref<3x32x32xf32, #tpu.memory_space<vmem>>, %arg3: memref<3x1x32xf32, #tpu.memory_space<vmem>>, %arg4: memref<2x256xf32, #tpu.memory_space<vmem>>) attributes {dimension_semantics = [#tpu.dimension_semantics<parallel>], iteration_bounds = array<i64: 1>, scalar_prefetch = 0 : i64, scratch_operands = 0 : i64, tpu.core_type = #tpu.core_type<tc>, window_params = [{transform_indices = @transform_0, window_bounds = array<i64: 2, 256>}, {pipeline_mode = #tpu.pipeline_mode<synchronous>, transform_indices = @transform_1, window_bounds = array<i64: 3, 32, 32>}, {pipeline_mode = #tpu.pipeline_mode<synchronous>, transform_indices = @transform_2, window_bounds = array<i64: 3, 1, 32>}, {transform_indices = @transform_3, window_bounds = array<i64: 2, 256>}]} {
    %c0 = arith.constant 0 : index
    %c0_0 = arith.constant 0 : index
    %0 = vector.load %arg1[%c0, %c0_0] : memref<2x256xf32, #tpu.memory_space<vmem>>, vector<2x256xf32>
    %1 = vector.shape_cast %0 : vector<2x256xf32> to vector<16x32xf32>
    %c0_1 = arith.constant 0 : index
    %c0_2 = arith.constant 0 : index
    %c0_3 = arith.constant 0 : index
    %2 = vector.load %arg2[%c0_1, %c0_2, %c0_3] : memref<3x32x32xf32, #tpu.memory_space<vmem>>, vector<1x32x32xf32>
    %3 = vector.shape_cast %2 : vector<1x32x32xf32> to vector<32x32xf32>
    %4 = arith.truncf %1 : vector<16x32xf32> to vector<16x32xbf16>
    %5 = arith.truncf %3 : vector<32x32xf32> to vector<32x32xbf16>
    %cst = arith.constant dense<0.000000e+00> : vector<16x32xf32>
    %6 = tpu.matmul %4, %5, %cst {dimension_numbers = #tpu.dot_dimension_numbers<[1], [0], [0], [1], [0, 0, 1, 1], [], []>} : vector<16x32xbf16>, vector<32x32xbf16>, vector<16x32xf32> -> vector<16x32xf32>
    %c0_4 = arith.constant 0 : index
    %c0_5 = arith.constant 0 : index
    %c0_6 = arith.constant 0 : index
    %7 = vector.load %arg3[%c0_4, %c0_5, %c0_6] : memref<3x1x32xf32, #tpu.memory_space<vmem>>, vector<1x1x32xf32>
    %8 = vector.shape_cast %7 : vector<1x1x32xf32> to vector<1x32xf32>
    %9 = vector.broadcast %8 : vector<1x32xf32> to vector<16x32xf32>
    %10 = arith.addf %6, %9 : vector<16x32xf32>
    %c1 = arith.constant 1 : index
    %c0_7 = arith.constant 0 : index
    %c0_8 = arith.constant 0 : index
    %11 = vector.load %arg2[%c1, %c0_7, %c0_8] : memref<3x32x32xf32, #tpu.memory_space<vmem>>, vector<1x32x32xf32>
    %12 = vector.shape_cast %11 : vector<1x32x32xf32> to vector<32x32xf32>
    %13 = arith.truncf %1 : vector<16x32xf32> to vector<16x32xbf16>
    %14 = arith.truncf %12 : vector<32x32xf32> to vector<32x32xbf16>
    %cst_9 = arith.constant dense<0.000000e+00> : vector<16x32xf32>
    %15 = tpu.matmul %13, %14, %cst_9 {dimension_numbers = #tpu.dot_dimension_numbers<[1], [0], [0], [1], [0, 0, 1, 1], [], []>} : vector<16x32xbf16>, vector<32x32xbf16>, vector<16x32xf32> -> vector<16x32xf32>
    %c1_10 = arith.constant 1 : index
    %c0_11 = arith.constant 0 : index
    %c0_12 = arith.constant 0 : index
    %16 = vector.load %arg3[%c1_10, %c0_11, %c0_12] : memref<3x1x32xf32, #tpu.memory_space<vmem>>, vector<1x1x32xf32>
    %17 = vector.shape_cast %16 : vector<1x1x32xf32> to vector<1x32xf32>
    %18 = vector.broadcast %17 : vector<1x32xf32> to vector<16x32xf32>
    %19 = arith.addf %15, %18 : vector<16x32xf32>
    %c2 = arith.constant 2 : index
    %c0_13 = arith.constant 0 : index
    %c0_14 = arith.constant 0 : index
    %20 = vector.load %arg2[%c2, %c0_13, %c0_14] : memref<3x32x32xf32, #tpu.memory_space<vmem>>, vector<1x32x32xf32>
    %21 = vector.shape_cast %20 : vector<1x32x32xf32> to vector<32x32xf32>
    %22 = arith.truncf %1 : vector<16x32xf32> to vector<16x32xbf16>
    %23 = arith.truncf %21 : vector<32x32xf32> to vector<32x32xbf16>
    %cst_15 = arith.constant dense<0.000000e+00> : vector<16x32xf32>
    %24 = tpu.matmul %22, %23, %cst_15 {dimension_numbers = #tpu.dot_dimension_numbers<[1], [0], [0], [1], [0, 0, 1, 1], [], []>} : vector<16x32xbf16>, vector<32x32xbf16>, vector<16x32xf32> -> vector<16x32xf32>
    %c2_16 = arith.constant 2 : index
    %c0_17 = arith.constant 0 : index
    %c0_18 = arith.constant 0 : index
    %25 = vector.load %arg3[%c2_16, %c0_17, %c0_18] : memref<3x1x32xf32, #tpu.memory_space<vmem>>, vector<1x1x32xf32>
    %26 = vector.shape_cast %25 : vector<1x1x32xf32> to vector<1x32xf32>
    %27 = vector.broadcast %26 : vector<1x32xf32> to vector<16x32xf32>
    %28 = arith.addf %24, %27 : vector<16x32xf32>
    %29 = vector.shape_cast %10 : vector<16x32xf32> to vector<2x8x32xf32>
    %30 = vector.shape_cast %19 : vector<16x32xf32> to vector<2x8x32xf32>
    %31 = vector.shape_cast %28 : vector<16x32xf32> to vector<2x8x32xf32>
    %32 = arith.truncf %29 : vector<2x8x32xf32> to vector<2x8x32xbf16>
    %33 = arith.truncf %30 : vector<2x8x32xf32> to vector<2x8x32xbf16>
    %34 = arith.truncf %31 : vector<2x8x32xf32> to vector<2x8x32xbf16>
    "tpu.trace_start"() <{level = 10 : i32, message = "bqe,bke->bqk"}> : () -> ()
    %cst_19 = arith.constant dense<0.000000e+00> : vector<2x8x8xf32>
    %35 = tpu.matmul %32, %33, %cst_19 {dimension_numbers = #tpu.dot_dimension_numbers<[2], [2], [1], [1], [0, 0, 0, 1, 1, 1], [0], [0]>} : vector<2x8x32xbf16>, vector<2x8x32xbf16>, vector<2x8x8xf32> -> vector<2x8x8xf32>
    "tpu.trace_stop"() : () -> ()
    %cst_20 = arith.constant dense<0xFF800000> : vector<2x8xf32>
    %36 = vector.multi_reduction <maximumf>, %35, %cst_20 [2] : vector<2x8x8xf32> to vector<2x8xf32>
    %37 = vector.shape_cast %36 : vector<2x8xf32> to vector<2x8x1xf32>
    %38 = vector.broadcast %37 : vector<2x8x1xf32> to vector<2x8x8xf32>
    %39 = arith.subf %35, %38 : vector<2x8x8xf32>
    %40 = math.exp %39 : vector<2x8x8xf32>
    %cst_21 = arith.constant dense<0.000000e+00> : vector<2x8xf32>
    %41 = vector.multi_reduction <add>, %40, %cst_21 [2] : vector<2x8x8xf32> to vector<2x8xf32>
    %42 = vector.shape_cast %41 : vector<2x8xf32> to vector<2x8x1xf32>
    %43 = tpu.reciprocal %42 {approx = true} : vector<2x8x1xf32> -> vector<2x8x1xf32>
    %44 = vector.broadcast %43 : vector<2x8x1xf32> to vector<2x8x8xf32>
    %45 = arith.mulf %40, %44 : vector<2x8x8xf32>
    %46 = arith.truncf %45 : vector<2x8x8xf32> to vector<2x8x8xbf16>
    "tpu.trace_start"() <{level = 10 : i32, message = "bqk,bke->bqe"}> : () -> ()
    %cst_22 = arith.constant dense<0.000000e+00> : vector<2x8x32xf32>
    %47 = tpu.matmul %46, %34, %cst_22 {dimension_numbers = #tpu.dot_dimension_numbers<[2], [1], [1], [2], [0, 0, 0, 1, 1, 2], [0], [0]>} : vector<2x8x8xbf16>, vector<2x8x32xbf16>, vector<2x8x32xf32> -> vector<2x8x32xf32>
    "tpu.trace_stop"() : () -> ()
    %48 = vector.shape_cast %47 : vector<2x8x32xf32> to vector<2x256xf32>
    %c0_23 = arith.constant 0 : index
    %c0_24 = arith.constant 0 : index
    %49 = vector.load %arg4[%c0_23, %c0_24] : memref<2x256xf32, #tpu.memory_space<vmem>>, vector<2x256xf32>
    tpu.vector_store %arg4[%c0_23, %c0_24], %48 {strides = array<i32>} : memref<2x256xf32, #tpu.memory_space<vmem>>, vector<2x256xf32>,
    return
  }
  func.func @transform_0(%arg0: i32) -> (i32, i32) {
    %c0_i32 = arith.constant 0 : i32
    %c0_i32_0 = arith.constant 0 : i32
    return %arg0, %c0_i32 : i32, i32
  }
  func.func @transform_1(%arg0: i32) -> (i32, i32, i32) {
    %c0_i32 = arith.constant 0 : i32
    %c0_i32_0 = arith.constant 0 : i32
    %c0_i32_1 = arith.constant 0 : i32
    %c0_i32_2 = arith.constant 0 : i32
    return %c0_i32, %c0_i32_0, %c0_i32_1 : i32, i32, i32
  }
  func.func @transform_2(%arg0: i32) -> (i32, i32, i32) {
    %c0_i32 = arith.constant 0 : i32
    %c0_i32_0 = arith.constant 0 : i32
    %c0_i32_1 = arith.constant 0 : i32
    %c0_i32_2 = arith.constant 0 : i32
    return %c0_i32, %c0_i32_0, %c0_i32_1 : i32, i32, i32
  }
  func.func @transform_3(%arg0: i32) -> (i32, i32) {
    %c0_i32 = arith.constant 0 : i32
    %c0_i32_0 = arith.constant 0 : i32
    return %arg0, %c0_i32 : i32, i32
  }
}

module attributes {stable_mosaic.version = 11 : i64} {
  func.func @_attention_kernel(%arg0: i32, %arg1: memref<1x8x32xf32, #tpu.memory_space<vmem>>, %arg2: memref<3x32x32xf32, #tpu.memory_space<vmem>>, %arg3: memref<3x1x32xf32, #tpu.memory_space<vmem>>, %arg4: memref<1x8x32xf32, #tpu.memory_space<vmem>>) attributes {dimension_semantics = [#tpu.dimension_semantics<parallel>], iteration_bounds = array<i64: 2>, scalar_prefetch = 0 : i64, scratch_operands = 0 : i64, tpu.core_type = #tpu.core_type<tc>, window_params = [{transform_indices = @transform_0, window_bounds = array<i64: 1, 8, 32>}, {pipeline_mode = #tpu.pipeline_mode<synchronous>, transform_indices = @transform_1, window_bounds = array<i64: 3, 32, 32>}, {pipeline_mode = #tpu.pipeline_mode<synchronous>, transform_indices = @transform_2, window_bounds = array<i64: 3, 1, 32>}, {transform_indices = @transform_3, window_bounds = array<i64: 1, 8, 32>}]} {
    %c0 = arith.constant 0 : index
    %c0_0 = arith.constant 0 : index
    %c0_1 = arith.constant 0 : index
    %0 = vector.load %arg1[%c0, %c0_0, %c0_1] : memref<1x8x32xf32, #tpu.memory_space<vmem>>, vector<1x8x32xf32>
    %1 = vector.shape_cast %0 : vector<1x8x32xf32> to vector<8x32xf32>
    %c0_2 = arith.constant 0 : index
    %c0_3 = arith.constant 0 : index
    %c0_4 = arith.constant 0 : index
    %2 = vector.load %arg2[%c0_2, %c0_3, %c0_4] : memref<3x32x32xf32, #tpu.memory_space<vmem>>, vector<1x32x32xf32>
    %3 = vector.shape_cast %2 : vector<1x32x32xf32> to vector<32x32xf32>
    %4 = arith.truncf %1 : vector<8x32xf32> to vector<8x32xbf16>
    %5 = arith.truncf %3 : vector<32x32xf32> to vector<32x32xbf16>
    %cst = arith.constant dense<0.000000e+00> : vector<8x32xf32>
    %6 = tpu.matmul %4, %5, %cst {dimension_numbers = #tpu.dot_dimension_numbers<[1], [0], [0], [1], [0, 0, 1, 1], [], []>} : vector<8x32xbf16>, vector<32x32xbf16>, vector<8x32xf32> -> vector<8x32xf32>
    %c0_5 = arith.constant 0 : index
    %c0_6 = arith.constant 0 : index
    %c0_7 = arith.constant 0 : index
    %7 = vector.load %arg3[%c0_5, %c0_6, %c0_7] : memref<3x1x32xf32, #tpu.memory_space<vmem>>, vector<1x1x32xf32>
    %8 = vector.shape_cast %7 : vector<1x1x32xf32> to vector<1x32xf32>
    %9 = vector.broadcast %8 : vector<1x32xf32> to vector<8x32xf32>
    %10 = arith.addf %6, %9 : vector<8x32xf32>
    %c1 = arith.constant 1 : index
    %c0_8 = arith.constant 0 : index
    %c0_9 = arith.constant 0 : index
    %11 = vector.load %arg2[%c1, %c0_8, %c0_9] : memref<3x32x32xf32, #tpu.memory_space<vmem>>, vector<1x32x32xf32>
    %12 = vector.shape_cast %11 : vector<1x32x32xf32> to vector<32x32xf32>
    %13 = arith.truncf %1 : vector<8x32xf32> to vector<8x32xbf16>
    %14 = arith.truncf %12 : vector<32x32xf32> to vector<32x32xbf16>
    %cst_10 = arith.constant dense<0.000000e+00> : vector<8x32xf32>
    %15 = tpu.matmul %13, %14, %cst_10 {dimension_numbers = #tpu.dot_dimension_numbers<[1], [0], [0], [1], [0, 0, 1, 1], [], []>} : vector<8x32xbf16>, vector<32x32xbf16>, vector<8x32xf32> -> vector<8x32xf32>
    %c1_11 = arith.constant 1 : index
    %c0_12 = arith.constant 0 : index
    %c0_13 = arith.constant 0 : index
    %16 = vector.load %arg3[%c1_11, %c0_12, %c0_13] : memref<3x1x32xf32, #tpu.memory_space<vmem>>, vector<1x1x32xf32>
    %17 = vector.shape_cast %16 : vector<1x1x32xf32> to vector<1x32xf32>
    %18 = vector.broadcast %17 : vector<1x32xf32> to vector<8x32xf32>
    %19 = arith.addf %15, %18 : vector<8x32xf32>
    %c2 = arith.constant 2 : index
    %c0_14 = arith.constant 0 : index
    %c0_15 = arith.constant 0 : index
    %20 = vector.load %arg2[%c2, %c0_14, %c0_15] : memref<3x32x32xf32, #tpu.memory_space<vmem>>, vector<1x32x32xf32>
    %21 = vector.shape_cast %20 : vector<1x32x32xf32> to vector<32x32xf32>
    %22 = arith.truncf %1 : vector<8x32xf32> to vector<8x32xbf16>
    %23 = arith.truncf %21 : vector<32x32xf32> to vector<32x32xbf16>
    %cst_16 = arith.constant dense<0.000000e+00> : vector<8x32xf32>
    %24 = tpu.matmul %22, %23, %cst_16 {dimension_numbers = #tpu.dot_dimension_numbers<[1], [0], [0], [1], [0, 0, 1, 1], [], []>} : vector<8x32xbf16>, vector<32x32xbf16>, vector<8x32xf32> -> vector<8x32xf32>
    %c2_17 = arith.constant 2 : index
    %c0_18 = arith.constant 0 : index
    %c0_19 = arith.constant 0 : index
    %25 = vector.load %arg3[%c2_17, %c0_18, %c0_19] : memref<3x1x32xf32, #tpu.memory_space<vmem>>, vector<1x1x32xf32>
    %26 = vector.shape_cast %25 : vector<1x1x32xf32> to vector<1x32xf32>
    %27 = vector.broadcast %26 : vector<1x32xf32> to vector<8x32xf32>
    %28 = arith.addf %24, %27 : vector<8x32xf32>
    %29 = vector.shape_cast %10 : vector<8x32xf32> to vector<1x8x32xf32>
    %30 = vector.shape_cast %19 : vector<8x32xf32> to vector<1x8x32xf32>
    %31 = vector.shape_cast %28 : vector<8x32xf32> to vector<1x8x32xf32>
    %32 = arith.truncf %29 : vector<1x8x32xf32> to vector<1x8x32xbf16>
    %33 = arith.truncf %30 : vector<1x8x32xf32> to vector<1x8x32xbf16>
    %34 = arith.truncf %31 : vector<1x8x32xf32> to vector<1x8x32xbf16>
    "tpu.trace_start"() <{level = 10 : i32, message = "bqe,bke->bqk"}> : () -> ()
    %cst_20 = arith.constant dense<0.000000e+00> : vector<1x8x8xf32>
    %35 = tpu.matmul %32, %33, %cst_20 {dimension_numbers = #tpu.dot_dimension_numbers<[2], [2], [1], [1], [0, 0, 0, 1, 1, 1], [0], [0]>} : vector<1x8x32xbf16>, vector<1x8x32xbf16>, vector<1x8x8xf32> -> vector<1x8x8xf32>
    "tpu.trace_stop"() : () -> ()
    %cst_21 = arith.constant dense<0xFF800000> : vector<1x8xf32>
    %36 = vector.multi_reduction <maximumf>, %35, %cst_21 [2] : vector<1x8x8xf32> to vector<1x8xf32>
    %37 = vector.shape_cast %36 : vector<1x8xf32> to vector<1x8x1xf32>
    %38 = vector.broadcast %37 : vector<1x8x1xf32> to vector<1x8x8xf32>
    %39 = arith.subf %35, %38 : vector<1x8x8xf32>
    %40 = math.exp %39 : vector<1x8x8xf32>
    %cst_22 = arith.constant dense<0.000000e+00> : vector<1x8xf32>
    %41 = vector.multi_reduction <add>, %40, %cst_22 [2] : vector<1x8x8xf32> to vector<1x8xf32>
    %42 = vector.shape_cast %41 : vector<1x8xf32> to vector<1x8x1xf32>
    %43 = tpu.reciprocal %42 {approx = true} : vector<1x8x1xf32> -> vector<1x8x1xf32>
    %44 = vector.broadcast %43 : vector<1x8x1xf32> to vector<1x8x8xf32>
    %45 = arith.mulf %40, %44 : vector<1x8x8xf32>
    %46 = arith.truncf %45 : vector<1x8x8xf32> to vector<1x8x8xbf16>
    "tpu.trace_start"() <{level = 10 : i32, message = "bqk,bke->bqe"}> : () -> ()
    %cst_23 = arith.constant dense<0.000000e+00> : vector<1x8x32xf32>
    %47 = tpu.matmul %46, %34, %cst_23 {dimension_numbers = #tpu.dot_dimension_numbers<[2], [1], [1], [2], [0, 0, 0, 1, 1, 2], [0], [0]>} : vector<1x8x8xbf16>, vector<1x8x32xbf16>, vector<1x8x32xf32> -> vector<1x8x32xf32>
    "tpu.trace_stop"() : () -> ()
    %c0_24 = arith.constant 0 : index
    %c0_25 = arith.constant 0 : index
    %c0_26 = arith.constant 0 : index
    %48 = vector.load %arg4[%c0_24, %c0_25, %c0_26] : memref<1x8x32xf32, #tpu.memory_space<vmem>>, vector<1x8x32xf32>
    tpu.vector_store %arg4[%c0_24, %c0_25, %c0_26], %47 {strides = array<i32>} : memref<1x8x32xf32, #tpu.memory_space<vmem>>, vector<1x8x32xf32>,
    return
  }
  func.func @transform_0(%arg0: i32) -> (i32, i32, i32) {
    %c0_i32 = arith.constant 0 : i32
    %c0_i32_0 = arith.constant 0 : i32
    %c0_i32_1 = arith.constant 0 : i32
    return %arg0, %c0_i32, %c0_i32_0 : i32, i32, i32
  }
  func.func @transform_1(%arg0: i32) -> (i32, i32, i32) {
    %c0_i32 = arith.constant 0 : i32
    %c0_i32_0 = arith.constant 0 : i32
    %c0_i32_1 = arith.constant 0 : i32
    %c0_i32_2 = arith.constant 0 : i32
    return %c0_i32, %c0_i32_0, %c0_i32_1 : i32, i32, i32
  }
  func.func @transform_2(%arg0: i32) -> (i32, i32, i32) {
    %c0_i32 = arith.constant 0 : i32
    %c0_i32_0 = arith.constant 0 : i32
    %c0_i32_1 = arith.constant 0 : i32
    %c0_i32_2 = arith.constant 0 : i32
    return %c0_i32, %c0_i32_0, %c0_i32_1 : i32, i32, i32
  }
  func.func @transform_3(%arg0: i32) -> (i32, i32, i32) {
    %c0_i32 = arith.constant 0 : i32
    %c0_i32_0 = arith.constant 0 : i32
    %c0_i32_1 = arith.constant 0 : i32
    return %arg0, %c0_i32, %c0_i32_0 : i32, i32, i32
  }
}

</mosaic_0001>

<llo_original>
// kernel: tpu_custom_call.1
$region0: #{tpu_custom_call.1}
  #allocation0 [shape = 'u32[]', space=smem, size = 0x4, offset = 0x4, fixed_abs, tag = 'smem constant byte address 0x4 - core index']
  #allocation1 [shape = 'u32[144,128]{1,0:T(1,128)}', space=vmem, size = 0x12000, scoped, tag = 'internal scratch']
  %s0 = inlined_call_operand.hbm [shape: f32[2,8,32], index: 0, kind: input, shape index: {}]
  %s1 = inlined_call_operand.hbm [shape: f32[3,32,32], index: 1, kind: input, shape index: {}]
  %s2 = inlined_call_operand.vmem [shape: f32[3,1,32], index: 2, kind: input, shape index: {}]
  %s3 = inlined_call_operand.hbm [shape: f32[2,8,32], index: 3, kind: output, shape index: {}]
  %s4 = sld [smem:[#allocation0]]
  $region53: #{tpu_custom_call.1} parent=0
    _
  %s6 = ssub.s32 1, %s4
  %s7 = scalar_select 0, %s6, %s4
  $region1: #{tpu_custom_call.1} parent=0
    #allocation2 [shape = 'u8[8192]{0}', space=vmem, size = 0x2000, scoped, tag = 'input window, operand 0']
    #allocation3 [shape = 's32[2]{0}', space=sflag, size = 0x8, scoped, tag = 'scoped memory for tpu_custom_call.1']
    #allocation4 [shape = 's32[2]{0}', space=sflag, size = 0x8, scoped, tag = 'scoped memory for tpu_custom_call.1']
    #allocation5 [shape = 'u8[49152]{0}', space=vmem, size = 0xc000, scoped, tag = 'input window, operand 1, single buffered']
    #allocation6 [shape = 's32[1]{0}', space=sflag, size = 0x4, scoped, tag = 'scoped memory for tpu_custom_call.1']
    #allocation7 [shape = 'u8[8192]{0}', space=vmem, size = 0x2000, scoped, tag = 'output window, operand 0']
    %8 = vsyncpa [#allocation3], 0
    %s9 = scalar_lea.sflag [#allocation3], 1
    %10 = vsyncpa %s9, 0
    %11 = vsyncpa [#allocation6], 0
    %12 = vsyncpa [#allocation4], 0
    %s13 = scalar_lea.sflag [#allocation4], 1
    %14 = vsyncpa %s13, 0
    loop: start=0, step=1, limit=4
    $region2: #{tpu_custom_call.1} parent=1 // loop_pre_header
      _
    $region3: #{tpu_custom_call.1} parent=1 // loop_header
      %s16 = sphi 0, %s20
      %p17 = scmp.ge.s32.totalorder %s16, 4
      %s26 = sphi 0, %s28
      %s29 = sphi 0, %s26
      %s30 = sphi 0, %s29
      %s46 = sphi 0, %s30
      %s50 = sphi 0, %s50
      %s52 = sphi 0, %s50
      %s53 = sphi 0, %s52
      %s67 = sphi 0, %s53
      %s71 = sphi 0, %s71
      %s73 = sphi 0, %s71
      %s74 = sphi 0, %s73
      %s88 = sphi 0, %s74
      %s94 = sphi 0, %s96
      %s97 = sphi 0, %s94
      %s98 = sphi 0, %s97
      %s114 = sphi 0, %s98
    $region4: #{tpu_custom_call.1} parent=1 // loop_header_branch
      %19 = sbr.rel (%p17) target = $region8
    $region5: #{tpu_custom_call.1} parent=1 // loop_body
      %s21 = ssub.s32 %s16, 1
      %s22 = ssub.s32 %s16, 2
      %s23 = sadd.s32 %s16, 1
      %s24 = ssub.s32 %s16, %s23
      %p25 = scmp.eq.s32.totalorder %s24, 0
      %s27 = sadd.s32 %s26, 1
      %s28 = scalar_select %p25, %s26, %s27
      %p31 = pneg %p25
      %p32 = scmp.eq.s32.totalorder %s16, 1
      %p33 = por %p31, %p32
      %p34 = scmp.ne.s32.totalorder %s26, %s29
      %p35 = scmp.eq.s32.totalorder %s16, 0
      %p36 = por %p34, %p35
      %p37 = scmp.ne.s32.totalorder %s26, %s29
      %p38 = scmp.eq.s32.totalorder %s21, 1
      %p39 = por %p37, %p38
      %p40 = scmp.ne.s32.totalorder %s29, %s30
      %p41 = scmp.eq.s32.totalorder %s21, 0
      %p42 = por %p40, %p41
      %p43 = scmp.ne.s32.totalorder %s29, %s30
      %p44 = scmp.eq.s32.totalorder %s22, 1
      %p45 = por %p43, %p44
      %p47 = scmp.ne.s32.totalorder %s30, %s46
      %p48 = scmp.eq.s32.totalorder %s22, 0
      %p49 = por %p47, %p48
      %s51 = sadd.s32 %s50, 1
      %p54 = scmp.eq.s32.totalorder %s16, 1
      %p55 = scmp.ne.s32.totalorder %s50, %s52
      %p56 = scmp.eq.s32.totalorder %s16, 0
      %p57 = por %p55, %p56
      %p58 = scmp.ne.s32.totalorder %s50, %s52
      %p59 = scmp.eq.s32.totalorder %s21, 1
      %p60 = por %p58, %p59
      %p61 = scmp.ne.s32.totalorder %s52, %s53
      %p62 = scmp.eq.s32.totalorder %s21, 0
      %p63 = por %p61, %p62
      %p64 = scmp.ne.s32.totalorder %s52, %s53
      %p65 = scmp.eq.s32.totalorder %s22, 1
      %p66 = por %p64, %p65
      %p68 = scmp.ne.s32.totalorder %s53, %s67
      %p69 = scmp.eq.s32.totalorder %s22, 0
      %p70 = por %p68, %p69
      %s72 = sadd.s32 %s71, 1
      %p75 = scmp.eq.s32.totalorder %s16, 1
      %p76 = scmp.ne.s32.totalorder %s71, %s73
      %p77 = scmp.eq.s32.totalorder %s16, 0
      %p78 = por %p76, %p77
      %p79 = scmp.ne.s32.totalorder %s71, %s73
      %p80 = scmp.eq.s32.totalorder %s21, 1
      %p81 = por %p79, %p80
      %p82 = scmp.ne.s32.totalorder %s73, %s74
      %p83 = scmp.eq.s32.totalorder %s21, 0
      %p84 = por %p82, %p83
      %p85 = scmp.ne.s32.totalorder %s73, %s74
      %p86 = scmp.eq.s32.totalorder %s22, 1
      %p87 = por %p85, %p86
      %p89 = scmp.ne.s32.totalorder %s74, %s88
      %p90 = scmp.eq.s32.totalorder %s22, 0
      %p91 = por %p89, %p90
      %s92 = ssub.s32 %s16, %s23
      %p93 = scmp.eq.s32.totalorder %s92, 0
      %s95 = sadd.s32 %s94, 1
      %s96 = scalar_select %p93, %s94, %s95
      %p99 = pneg %p93
      %p100 = scmp.eq.s32.totalorder %s16, 1
      %p101 = por %p99, %p100
      %p102 = scmp.ne.s32.totalorder %s94, %s97
      %p103 = scmp.eq.s32.totalorder %s16, 0
      %p104 = por %p102, %p103
      %p105 = scmp.ne.s32.totalorder %s94, %s97
      %p106 = scmp.eq.s32.totalorder %s21, 1
      %p107 = por %p105, %p106
      %p108 = scmp.ne.s32.totalorder %s97, %s98
      %p109 = scmp.eq.s32.totalorder %s21, 0
      %p110 = por %p108, %p109
      %p111 = scmp.ne.s32.totalorder %s97, %s98
      %p112 = scmp.eq.s32.totalorder %s22, 1
      %p113 = por %p111, %p112
      %p115 = scmp.ne.s32.totalorder %s98, %s114
      %p116 = scmp.eq.s32.totalorder %s22, 0
      %p117 = por %p115, %p116
      %p118 = scmp.le.s32.totalorder 1, %s16
      %p119 = scmp.lt.s32.totalorder %s16, 3
      %p120 = pnand %p118, %p119
      %p121 = pneg %p120
      // Predicated region
      $region9: #{tpu_custom_call.1} parent=5 // pred_check
        _
      $region10: #{tpu_custom_call.1} parent=5 // pred_check_branch
        %123 = sbr.rel (%p120) target = $region12
      $region11: #{tpu_custom_call.1} parent=5 // pred_region
        %s124 = ssub.s32 %s16, 1
        // Predicated region
        $region13: #{tpu_custom_call.1} parent=11 // pred_check
          %p125 = pneg %p63
        $region14: #{tpu_custom_call.1} parent=11 // pred_check_branch
          %127 = sbr.rel (%p125) target = $region16
        $region15: #{tpu_custom_call.1} parent=11 // pred_region
          %s129 = ssub.s32 1536, 1536
          %130 = vsyncadd [#allocation6], %s129
          %s131 = sshll.u32 [#allocation5], 4
          %s132 = int_to_ptr.vmem [resolvable:$true] %s131
          %137 = dma.hbm_to_vmem [thread:$0]  %s1, 1536, %s132, [#allocation6], 128, 128, 8
        $region16: #{tpu_custom_call.1} parent=11 // pred_fallthru
          _
        // Predicated region
        $region17: #{tpu_custom_call.1} parent=11 // pred_check
          %p138 = pneg %p84
        $region18: #{tpu_custom_call.1} parent=11 // pred_check_branch
          %140 = sbr.rel (%p138) target = $region20
        $region19: #{tpu_custom_call.1} parent=11 // pred_region
          _
        $region20: #{tpu_custom_call.1} parent=11 // pred_fallthru
          _
      $region12: #{tpu_custom_call.1} parent=5 // pred_fallthru
        _
      %p141 = scmp.lt.s32.totalorder %s16, 2
      // Predicated region
      $region21: #{tpu_custom_call.1} parent=5 // pred_check
        %p142 = pneg %p141
      $region22: #{tpu_custom_call.1} parent=5 // pred_check_branch
        %144 = sbr.rel (%p142) target = $region24
      $region23: #{tpu_custom_call.1} parent=5 // pred_region
        // Predicated region
        $region25: #{tpu_custom_call.1} parent=23 // pred_check
          %p145 = pneg %p36
        $region26: #{tpu_custom_call.1} parent=23 // pred_check_branch
          %147 = sbr.rel (%p145) target = $region28
        $region27: #{tpu_custom_call.1} parent=23 // pred_region
          %s148 = sand.u32 %s26, 1
          %s149 = scalar_lea.sflag [#allocation3], %s148
          %s150 = sand.u32 %s26, 1
          %s151 = smul.addr %s150, 8
          %s152 = scalar_lea.vmem [#allocation2], %s151
          %s154 = ssub.s32 128, 128
          %155 = vsyncadd %s149, %s154
          %s156 = smul.addr %s16, 128
          %s157 = scalar_lea.hbm %s0, %s156
          %s159 = sshll.u32 %s152, 4
          %s160 = int_to_ptr.vmem [resolvable:$true] %s159
          %162 = dma.hbm_to_vmem [thread:$0]  %s157, 128, %s160, %s149
        $region28: #{tpu_custom_call.1} parent=23 // pred_fallthru
          _
      $region24: #{tpu_custom_call.1} parent=5 // pred_fallthru
        _
      %p163 = scmp.le.s32.totalorder 1, %s16
      %p164 = scmp.lt.s32.totalorder %s16, 3
      %p165 = pnand %p163, %p164
      %p166 = pneg %p165
      // Predicated region
      $region29: #{tpu_custom_call.1} parent=5 // pred_check
        _
      $region30: #{tpu_custom_call.1} parent=5 // pred_check_branch
        %168 = sbr.rel (%p165) target = $region32
      $region31: #{tpu_custom_call.1} parent=5 // pred_region
        %s169 = ssub.s32 %s16, 1
        %s170 = sand.u32 %s29, 1
        %s171 = scalar_lea.sflag [#allocation3], %s170
        %s172 = sand.u32 %s29, 1
        %s173 = smul.addr %s172, 8
        %s174 = scalar_lea.vmem [#allocation2], %s173
        // Predicated region
        $region33: #{tpu_custom_call.1} parent=31 // pred_check
          %p175 = pneg %p42
        $region34: #{tpu_custom_call.1} parent=31 // pred_check_branch
          %177 = sbr.rel (%p175) target = $region36
        $region35: #{tpu_custom_call.1} parent=31 // pred_region
          %178 = dma.done %s171, 128
        $region36: #{tpu_custom_call.1} parent=31 // pred_fallthru
          _
        // Predicated region
        $region37: #{tpu_custom_call.1} parent=31 // pred_check
          %p179 = pneg %p63
        $region38: #{tpu_custom_call.1} parent=31 // pred_check_branch
          %181 = sbr.rel (%p179) target = $region40
        $region39: #{tpu_custom_call.1} parent=31 // pred_region
          %182 = dma.done [#allocation6], 1536
        $region40: #{tpu_custom_call.1} parent=31 // pred_fallthru
          _
        %s183 = sand.u32 %s29, 1
        %s184 = scalar_lea.sflag [#allocation3], %s183
        %s185 = sand.u32 %s29, 1
        %s186 = smul.addr %s185, 8
        %s187 = scalar_lea.vmem [#allocation2], %s186
        %p188 = pneg %p42
        %p189 = pneg %p39
        %p190 = pneg %p63
        %p191 = pneg %p60
        %p192 = pneg %p84
        %p193 = pneg %p81
        %p194 = pneg %p110
        %p195 = pneg %p107
        %s196 = sand.u32 %s97, 1
        %s197 = scalar_lea.sflag [#allocation4], %s196
        %s198 = sand.u32 %s97, 1
        %s199 = smul.addr %s198, 8
        %s200 = scalar_lea.vmem [#allocation7], %s199
        %v202 = vld [vmem:[%s174] sm:$0xff]
        %v203 = vld [vmem:[#allocation5] sm:$0xff]
        %v204 = vld [vmem:[#allocation5 + $0x8] sm:$0xff]
        %v205 = vld [vmem:[#allocation5 + $0x10] sm:$0xff]
        %v206 = vld [vmem:[#allocation5 + $0x18] sm:$0xff]
        %v207 = vpack.c.bf16 %v202, %v202
        %v208 = vpack.c.bf16 %v204, %v203
        %v209 = vpack.c.bf16 %v206, %v205
        %v210 = vld [vmem:[%s2] sm:$0x1]
        %v212 = vlaneseq
        %v213 = vshrl.u32 %v212, 7
        %v214 = vsub.s32 0, %v213
        %v215 = vrot.slane %v210, %v214
        %vm217 = vcmask 261120
        %v219 = vsel %vm217, %v207, 0
        %221 = vmatprep.subr.bf16.mxu0 0
        %222 = vmatpush1.bf16.msra.mxu0 %v208
        %223 = vmatprep.subr.bf16.mxu0 0
        %224 = vmatpush1.bf16.msra.mxu0 %v209
        %225 = vmatprep.subr.bf16.mxu0 0
        %226 = vmatpush1.bf16.msra.mxu0 0
        %227 = vmatprep.subr.bf16.mxu0 0
        %228 = vmatpush1.bf16.msra.mxu0 0
        %229 = vmatprep.subr.bf16.mxu0 0
        %230 = vmatpush1.bf16.msra.mxu0 0
        %231 = vmatprep.subr.bf16.mxu0 0
        %232 = vmatpush1.bf16.msra.mxu0 0
        %233 = vmatprep.subr.bf16.mxu0 0
        %234 = vmatpush1.bf16.msra.mxu0 0
        %235 = vmatprep.subr.bf16.mxu0 0
        %236 = vmatpush1.bf16.msra.mxu0 0
        %237 = vmatprep.subr.bf16.mxu0 0
        %238 = vmatpush1.bf16.msra.mxu0 0
        %239 = vmatprep.subr.bf16.mxu0 0
        %240 = vmatpush1.bf16.msra.mxu0 0
        %241 = vmatprep.subr.bf16.mxu0 0
        %242 = vmatpush1.bf16.msra.mxu0 0
        %243 = vmatprep.subr.bf16.mxu0 0
        %244 = vmatpush1.bf16.msra.mxu0 0
        %245 = vmatprep.subr.bf16.mxu0 0
        %246 = vmatpush1.bf16.msra.mxu0 0
        %247 = vmatprep.subr.bf16.mxu0 0
        %248 = vmatpush1.bf16.msra.mxu0 0
        %249 = vmatprep.subr.bf16.mxu0 0
        %250 = vmatpush1.bf16.msra.mxu0 0
        %251 = vmatprep.subr.bf16.mxu0 0
        %252 = vmatpush1.bf16.msra.mxu0 0
        %253 = vmatprep.mubr.bf16.mxu0 0
        %254 = vmatmul.mubr.bf16.gmra.mrb[0].mxu0 %v219
        %v255 = vpop.f32.mrb[0].mxu0
        %v256 = vadd.f32 %v215, %v255
        %v257 = vpop.f32.mrb[0].mxu0
        %v258 = vpop.f32.mrb[0].mxu0
        %v259 = vpop.f32.mrb[0].mxu0
        %260 = vdwg.mxu0
        %s261 = scalar_lea.vmem [#allocation5], 32
        %v262 = vld [vmem:[%s261] sm:$0xff]
        %v263 = vld [vmem:[%s261 + $0x8] sm:$0xff]
        %v264 = vld [vmem:[%s261 + $0x10] sm:$0xff]
        %v265 = vld [vmem:[%s261 + $0x18] sm:$0xff]
        %v266 = vpack.c.bf16 %v263, %v262
        %v267 = vpack.c.bf16 %v265, %v264
        %s268 = scalar_lea.vmem %s2, 1
        %v269 = vld [vmem:[%s268] sm:$0x1]
        %v271 = vlaneseq
        %v272 = vshrl.u32 %v271, 7
        %v273 = vsub.s32 0, %v272
        %v274 = vrot.slane %v269, %v273
        %276 = vmatprep.subr.bf16.mxu0 0
        %277 = vmatpush1.bf16.msra.mxu0 %v266
        %278 = vmatprep.subr.bf16.mxu0 0
        %279 = vmatpush1.bf16.msra.mxu0 %v267
        %280 = vmatprep.subr.bf16.mxu0 0
        %281 = vmatpush1.bf16.msra.mxu0 0
        %282 = vmatprep.subr.bf16.mxu0 0
        %283 = vmatpush1.bf16.msra.mxu0 0
        %284 = vmatprep.subr.bf16.mxu0 0
        %285 = vmatpush1.bf16.msra.mxu0 0
        %286 = vmatprep.subr.bf16.mxu0 0
        %287 = vmatpush1.bf16.msra.mxu0 0
        %288 = vmatprep.subr.bf16.mxu0 0
        %289 = vmatpush1.bf16.msra.mxu0 0
        %290 = vmatprep.subr.bf16.mxu0 0
        %291 = vmatpush1.bf16.msra.mxu0 0
        %292 = vmatprep.subr.bf16.mxu0 0
        %293 = vmatpush1.bf16.msra.mxu0 0
        %294 = vmatprep.subr.bf16.mxu0 0
        %295 = vmatpush1.bf16.msra.mxu0 0
        %296 = vmatprep.subr.bf16.mxu0 0
        %297 = vmatpush1.bf16.msra.mxu0 0
        %298 = vmatprep.subr.bf16.mxu0 0
        %299 = vmatpush1.bf16.msra.mxu0 0
        %300 = vmatprep.subr.bf16.mxu0 0
        %301 = vmatpush1.bf16.msra.mxu0 0
        %302 = vmatprep.subr.bf16.mxu0 0
        %303 = vmatpush1.bf16.msra.mxu0 0
        %304 = vmatprep.subr.bf16.mxu0 0
        %305 = vmatpush1.bf16.msra.mxu0 0
        %306 = vmatprep.subr.bf16.mxu0 0
        %307 = vmatpush1.bf16.msra.mxu0 0
        %308 = vmatprep.mubr.bf16.mxu0 0
        %309 = vmatmul.mubr.bf16.gmra.mrb[0].mxu0 %v219
        %v310 = vpop.f32.mrb[0].mxu0
        %v311 = vadd.f32 %v274, %v310
        %v312 = vpop.f32.mrb[0].mxu0
        %v313 = vpop.f32.mrb[0].mxu0
        %v314 = vpop.f32.mrb[0].mxu0
        %315 = vdwg.mxu0
        %s316 = scalar_lea.vmem [#allocation5], 64
        %v317 = vld [vmem:[%s316] sm:$0xff]
        %v318 = vld [vmem:[%s316 + $0x8] sm:$0xff]
        %v319 = vld [vmem:[%s316 + $0x10] sm:$0xff]
        %v320 = vld [vmem:[%s316 + $0x18] sm:$0xff]
        %v321 = vpack.c.bf16 %v318, %v317
        %v322 = vpack.c.bf16 %v320, %v319
        %s323 = scalar_lea.vmem %s2, 2
        %v324 = vld [vmem:[%s323] sm:$0x1]
        %v326 = vlaneseq
        %v327 = vshrl.u32 %v326, 7
        %v328 = vsub.s32 0, %v327
        %v329 = vrot.slane %v324, %v328
        %331 = vmatprep.subr.bf16.mxu0 0
        %332 = vmatpush1.bf16.msra.mxu0 %v321
        %333 = vmatprep.subr.bf16.mxu0 0
        %334 = vmatpush1.bf16.msra.mxu0 %v322
        %335 = vmatprep.subr.bf16.mxu0 0
        %336 = vmatpush1.bf16.msra.mxu0 0
        %337 = vmatprep.subr.bf16.mxu0 0
        %338 = vmatpush1.bf16.msra.mxu0 0
        %339 = vmatprep.subr.bf16.mxu0 0
        %340 = vmatpush1.bf16.msra.mxu0 0
        %341 = vmatprep.subr.bf16.mxu0 0
        %342 = vmatpush1.bf16.msra.mxu0 0
        %343 = vmatprep.subr.bf16.mxu0 0
        %344 = vmatpush1.bf16.msra.mxu0 0
        %345 = vmatprep.subr.bf16.mxu0 0
        %346 = vmatpush1.bf16.msra.mxu0 0
        %347 = vmatprep.subr.bf16.mxu0 0
        %348 = vmatpush1.bf16.msra.mxu0 0
        %349 = vmatprep.subr.bf16.mxu0 0
        %350 = vmatpush1.bf16.msra.mxu0 0
        %351 = vmatprep.subr.bf16.mxu0 0
        %352 = vmatpush1.bf16.msra.mxu0 0
        %353 = vmatprep.subr.bf16.mxu0 0
        %354 = vmatpush1.bf16.msra.mxu0 0
        %355 = vmatprep.subr.bf16.mxu0 0
        %356 = vmatpush1.bf16.msra.mxu0 0
        %357 = vmatprep.subr.bf16.mxu0 0
        %358 = vmatpush1.bf16.msra.mxu0 0
        %359 = vmatprep.subr.bf16.mxu0 0
        %360 = vmatpush1.bf16.msra.mxu0 0
        %361 = vmatprep.subr.bf16.mxu0 0
        %362 = vmatpush1.bf16.msra.mxu0 0
        %363 = vmatprep.mubr.bf16.mxu0 0
        %364 = vmatmul.mubr.bf16.gmra.mrb[0].mxu0 %v219
        %v365 = vpop.f32.mrb[0].mxu0
        %v366 = vadd.f32 %v329, %v365
        %v367 = vpop.f32.mrb[0].mxu0
        %v368 = vpop.f32.mrb[0].mxu0
        %v369 = vpop.f32.mrb[0].mxu0
        %370 = vdwg.mxu0
        %v371 = vpack.c.bf16 %v256, %v256
        %v372 = vpack.c.bf16 %v311, %v311
        %v373 = vpack.c.bf16 %v366, %v366
        %v375 = vsel %vm217, %v371, 0
        %v378 = vsel %vm217, %v372, 0
        %380 = vmatprep.subr.bf16.mxu0 0
        %381 = vmatpush1.bf16.xpose.msra.mxu0 %v378
        %382 = vmatprep.subr.bf16.mxu0 0
        %383 = vmatpush1.bf16.xpose.msra.mxu0 0
        %384 = vmatprep.subr.bf16.mxu0 0
        %385 = vmatpush1.bf16.xpose.msra.mxu0 0
        %386 = vmatprep.subr.bf16.mxu0 0
        %387 = vmatpush1.bf16.xpose.msra.mxu0 0
        %388 = vmatprep.subr.bf16.mxu0 0
        %389 = vmatpush1.bf16.xpose.msra.mxu0 0
        %390 = vmatprep.subr.bf16.mxu0 0
        %391 = vmatpush1.bf16.xpose.msra.mxu0 0
        %392 = vmatprep.subr.bf16.mxu0 0
        %393 = vmatpush1.bf16.xpose.msra.mxu0 0
        %394 = vmatprep.subr.bf16.mxu0 0
        %395 = vmatpush1.bf16.xpose.msra.mxu0 0
        %396 = vmatprep.subr.bf16.mxu0 0
        %397 = vmatpush1.bf16.xpose.msra.mxu0 0
        %398 = vmatprep.subr.bf16.mxu0 0
        %399 = vmatpush1.bf16.xpose.msra.mxu0 0
        %400 = vmatprep.subr.bf16.mxu0 0
        %401 = vmatpush1.bf16.xpose.msra.mxu0 0
        %402 = vmatprep.subr.bf16.mxu0 0
        %403 = vmatpush1.bf16.xpose.msra.mxu0 0
        %404 = vmatprep.subr.bf16.mxu0 0
        %405 = vmatpush1.bf16.xpose.msra.mxu0 0
        %406 = vmatprep.subr.bf16.mxu0 0
        %407 = vmatpush1.bf16.xpose.msra.mxu0 0
        %408 = vmatprep.subr.bf16.mxu0 0
        %409 = vmatpush1.bf16.xpose.msra.mxu0 0
        %410 = vmatprep.subr.bf16.mxu0 0
        %411 = vmatpush1.bf16.xpose.msra.mxu0 0
        %412 = vmatprep.mubr.bf16.mxu0 0
        %413 = vmatmul.mubr.bf16.gmra.mrb[0].mxu0 %v375
        %v414 = vpop.f32.mrb[0].mxu0
        %v415 = vadd.f32 0.0, %v414
        %v416 = vpop.f32.mrb[0].mxu0
        %v417 = vpop.f32.mrb[0].mxu0
        %v418 = vpop.f32.mrb[0].mxu0
        %419 = vdwg.mxu0
        %vm420 = vcmask 64512
        %v421 = vsel %vm420, %v415, -inf
        %422 = vmax.xlane.f32.xlu0 %v421
        %v423 = vpop.xlane.xlu0 %422
        %v424 = vsub.f32 %v415, %v423
        %v425 = vmul.f32 %v424, 1.442695
        %v426 = vpow.pop %v425
        %v427 = vsel %vm420, %v426, 0.0
        %428 = vadd.xlane.f32.xlu0 %v427
        %v429 = vpop.xlane.xlu0 %428
        %v430 = vrcp.pop %v429
        %v431 = vmul.f32 %v426, %v430
        %v432 = vpack.c.bf16 %v431, %v431
        %v434 = vsel %vm420, %v432, 0
        %vm436 = vcmask 1043456
        %v438 = vsel %vm436, %v373, 0
        %440 = vmatprep.subr.bf16.mxu0 0
        %441 = vmatpush1.bf16.msra.mxu0 %v438
        %442 = vmatprep.subr.bf16.mxu0 0
        %443 = vmatpush1.bf16.msra.mxu0 0
        %444 = vmatprep.subr.bf16.mxu0 0
        %445 = vmatpush1.bf16.msra.mxu0 0
        %446 = vmatprep.subr.bf16.mxu0 0
        %447 = vmatpush1.bf16.msra.mxu0 0
        %448 = vmatprep.subr.bf16.mxu0 0
        %449 = vmatpush1.bf16.msra.mxu0 0
        %450 = vmatprep.subr.bf16.mxu0 0
        %451 = vmatpush1.bf16.msra.mxu0 0
        %452 = vmatprep.subr.bf16.mxu0 0
        %453 = vmatpush1.bf16.msra.mxu0 0
        %454 = vmatprep.subr.bf16.mxu0 0
        %455 = vmatpush1.bf16.msra.mxu0 0
        %456 = vmatprep.subr.bf16.mxu0 0
        %457 = vmatpush1.bf16.msra.mxu0 0
        %458 = vmatprep.subr.bf16.mxu0 0
        %459 = vmatpush1.bf16.msra.mxu0 0
        %460 = vmatprep.subr.bf16.mxu0 0
        %461 = vmatpush1.bf16.msra.mxu0 0
        %462 = vmatprep.subr.bf16.mxu0 0
        %463 = vmatpush1.bf16.msra.mxu0 0
        %464 = vmatprep.subr.bf16.mxu0 0
        %465 = vmatpush1.bf16.msra.mxu0 0
        %466 = vmatprep.subr.bf16.mxu0 0
        %467 = vmatpush1.bf16.msra.mxu0 0
        %468 = vmatprep.subr.bf16.mxu0 0
        %469 = vmatpush1.bf16.msra.mxu0 0
        %470 = vmatprep.subr.bf16.mxu0 0
        %471 = vmatpush1.bf16.msra.mxu0 0
        %472 = vmatprep.mubr.bf16.mxu0 0
        %473 = vmatmul.mubr.bf16.gmra.mrb[0].mxu0 %v434
        %v474 = vpop.f32.mrb[0].mxu0
        %v475 = vadd.f32 0.0, %v474
        %v476 = vpop.f32.mrb[0].mxu0
        %v477 = vpop.f32.mrb[0].mxu0
        %v478 = vpop.f32.mrb[0].mxu0
        %479 = vdwg.mxu0
        %480 = vst.msk [vmem:[%s200] sm:$0xff] %vm217, %v475
        %s481 = sand.u32 %s97, 1
        %s482 = scalar_lea.sflag [#allocation4], %s481
        %s483 = sand.u32 %s97, 1
        %s484 = smul.addr %s483, 8
        %s485 = scalar_lea.vmem [#allocation7], %s484
        // Predicated region
        $region41: #{tpu_custom_call.1} parent=31 // pred_check
          %p486 = pneg %p107
        $region42: #{tpu_custom_call.1} parent=31 // pred_check_branch
          %488 = sbr.rel (%p486) target = $region44
        $region43: #{tpu_custom_call.1} parent=31 // pred_region
          %s490 = ssub.s32 128, 128
          %491 = vsyncadd %s482, %s490
          %s492 = smul.addr %s21, 128
          %s493 = scalar_lea.hbm %s3, %s492
          %s495 = sshll.u32 %s485, 4
          %s496 = int_to_ptr.vmem [resolvable:$true] %s495
          %498 = dma.vmem_to_hbm [thread:$0]  %s496, 128, %s493, %s482
        $region44: #{tpu_custom_call.1} parent=31 // pred_fallthru
          _
      $region32: #{tpu_custom_call.1} parent=5 // pred_fallthru
        _
      %p499 = scmp.le.s32.totalorder 2, %s16
      // Predicated region
      $region45: #{tpu_custom_call.1} parent=5 // pred_check
        %p500 = pneg %p499
      $region46: #{tpu_custom_call.1} parent=5 // pred_check_branch
        %502 = sbr.rel (%p500) target = $region48
      $region47: #{tpu_custom_call.1} parent=5 // pred_region
        %s503 = ssub.s32 %s16, 2
        // Predicated region
        $region49: #{tpu_custom_call.1} parent=47 // pred_check
          %p504 = pneg %p113
        $region50: #{tpu_custom_call.1} parent=47 // pred_check_branch
          %506 = sbr.rel (%p504) target = $region52
        $region51: #{tpu_custom_call.1} parent=47 // pred_region
          %s507 = sand.u32 %s98, 1
          %s508 = scalar_lea.sflag [#allocation4], %s507
          %s509 = sand.u32 %s98, 1
          %s510 = smul.addr %s509, 8
          %s511 = scalar_lea.vmem [#allocation7], %s510
          %512 = dma.done %s508, 128
        $region52: #{tpu_custom_call.1} parent=47 // pred_fallthru
          _
      $region48: #{tpu_custom_call.1} parent=5 // pred_fallthru
        _
    $region6: #{tpu_custom_call.1} parent=1 // loop_footer
      %s20 = sadd.s32 1, %s16
    $region7: #{tpu_custom_call.1} parent=1 // loop_footer_branch
      %15 = sbr.rel target = $region3
    $region8: #{tpu_custom_call.1} parent=1 // loop_exit
      _
    %513 = vsyncpa [#allocation3], 1
    %s514 = scalar_lea.sflag [#allocation3], 1
    %515 = vsyncpa %s514, 1
    %516 = vsyncpa [#allocation6], 1
    %517 = vsyncpa [#allocation4], 1
    %s518 = scalar_lea.sflag [#allocation4], 1
    %519 = vsyncpa %s518, 1

</llo_original>
